<compile_context>
chip_gen: v5e
topology: v5e:2x2
jax: 0.10.0
libtpu: 0.0.40
codegen_flags: <defaults>
</compile_context>

<pallas_src>
import functools

import jax
import jax.numpy as jnp
from jax import lax
from jax.experimental import pallas as pl
from jax.experimental.pallas import tpu as pltpu


def _ls_ce_kernel(preds_ref, target_ref, neg_ref, nll_ref, *, n_cls):
    """Per-row partials for label-smoothing cross entropy.

    neg_ref[r, 0] = -sum_c log_softmax(x)[r, c] = C * lse_r - sum_c x[r, c]
    nll_ref[r, 0] = -log_softmax(x)[r, t_r]     = lse_r - x[r, t_r]
    """
    x = preds_ref[...].astype(jnp.float32)                          # (tm, C)
    m = jnp.max(x, axis=-1, keepdims=True)                          # (tm, 1)
    lse = m + jnp.log(jnp.sum(jnp.exp(x - m), axis=-1, keepdims=True))
    row_sum = jnp.sum(x, axis=-1, keepdims=True)                    # (tm, 1)
    neg_ref[...] = n_cls * lse - row_sum

    tgt = target_ref[...]                                           # (tm, 1) int32
    col = lax.broadcasted_iota(jnp.int32, x.shape, 1)
    gathered = jnp.sum(jnp.where(col == tgt, x, 0.0), axis=-1, keepdims=True)
    nll_ref[...] = lse - gathered


def _round_up(x, m):
    return (x + m - 1) // m * m


def _choose_tm(n_rows, n_cls, itemsize, vmem_budget_bytes=32 << 20):
    # Per-row VMEM cost: double-buffered input block (2 * C * itemsize) plus
    # roughly two (tm, C) f32 temporaries inside the kernel (upcast + exp).
    per_row = 2 * n_cls * itemsize + 2 * n_cls * 4
    tm = vmem_budget_bytes // max(per_row, 1)
    tm = min(int(tm), 2048, _round_up(n_rows, 8))
    tm = max(8, (tm // 8) * 8)
    return tm


def label_smoothing_cross_entropy(preds, target, epsilon=0.1, *, tm=None):
    """Pallas implementation of LabelSmoothingCrossEntropy(reduction='mean')."""
    N, C = preds.shape
    if tm is None:
        tm = _choose_tm(N, C, jnp.dtype(preds.dtype).itemsize)
    tm = max(8, (tm // 8) * 8)

    # Pad batch to a multiple of the row tile; padded rows are sliced off later.
    n_pad = _round_up(N, tm)
    if n_pad != N:
        preds = jnp.pad(preds, ((0, n_pad - N), (0, 0)))
        target = jnp.pad(target, (0, n_pad - N))
    target2d = target.astype(jnp.int32).reshape(n_pad, 1)

    kernel = functools.partial(_ls_ce_kernel, n_cls=float(C))

    neg, nll = pl.pallas_call(
        kernel,
        out_shape=(
            jax.ShapeDtypeStruct((n_pad, 1), jnp.float32),
            jax.ShapeDtypeStruct((n_pad, 1), jnp.float32),
        ),
        grid_spec=pltpu.PrefetchScalarGridSpec(
            num_scalar_prefetch=0,
            grid=(n_pad // tm,),
            in_specs=[
                pl.BlockSpec((tm, C), lambda i: (i, 0)),
                pl.BlockSpec((tm, 1), lambda i: (i, 0)),
            ],
            out_specs=[
                pl.BlockSpec((tm, 1), lambda i: (i, 0)),
                pl.BlockSpec((tm, 1), lambda i: (i, 0)),
            ],
        ),
        compiler_params=pltpu.CompilerParams(
            dimension_semantics=("parallel",),   # independent blocks -> megacore-safe
            vmem_limit_bytes=48 << 20,           # safe on v7x (64 MiB) and v5e/v6e
        ),
    )(preds, target2d)

    neg = neg[:N, 0]
    nll = nll[:N, 0]
    loss_mean = jnp.mean(neg)     # mean over rows of -sum_c log_p
    nll_mean = jnp.mean(nll)      # mean nll
    return epsilon * (loss_mean / C) + (1.0 - epsilon) * nll_mean


def _reference(preds, target, epsilon=0.1):
    n = preds.shape[-1]
    log_preds = jax.nn.log_softmax(preds.astype(jnp.float32), axis=-1)
    loss = jnp.mean(-jnp.sum(log_preds, axis=-1))
    nll = jnp.mean(-jnp.take_along_axis(log_preds, target[:, None], axis=-1))
    return epsilon * (loss / n) + (1.0 - epsilon) * nll


if __name__ == "__main__":
    key = jax.random.PRNGKey(0)
    kp, kt = jax.random.split(key)
    N, C = 16, 32
    preds = jax.random.normal(kp, (N, C), dtype=jnp.float32)
    target = jax.random.randint(kt, (N,), 0, C, dtype=jnp.int32)

    out = label_smoothing_cross_entropy(preds, target, epsilon=0.1)
    out = jax.block_until_ready(out)

    ref = _reference(preds, target, epsilon=0.1)
    assert jnp.allclose(out, ref, atol=1e-5, rtol=1e-5), (out, ref)
    print("KERNEL_OK")
</pallas_src>

<mosaic_0001>
module attributes {stable_mosaic.version = 11 : i64} {
  func.func @_ls_ce_kernel(%arg0: i32, %arg1: memref<16x32xf32, #tpu.memory_space<vmem>>, %arg2: memref<16x1xi32, #tpu.memory_space<vmem>>, %arg3: memref<16x1xf32, #tpu.memory_space<vmem>>, %arg4: memref<16x1xf32, #tpu.memory_space<vmem>>) attributes {dimension_semantics = [#tpu.dimension_semantics<parallel>], iteration_bounds = array<i64: 1>, scalar_prefetch = 0 : i64, scratch_operands = 0 : i64, tpu.core_type = #tpu.core_type<tc>, window_params = [{transform_indices = @transform_0, window_bounds = array<i64: 16, 32>}, {transform_indices = @transform_1, window_bounds = array<i64: 16, 1>}, {transform_indices = @transform_2, window_bounds = array<i64: 16, 1>}, {transform_indices = @transform_3, window_bounds = array<i64: 16, 1>}]} {
    %c0 = arith.constant 0 : index
    %c0_0 = arith.constant 0 : index
    %0 = vector.load %arg1[%c0, %c0_0] : memref<16x32xf32, #tpu.memory_space<vmem>>, vector<16x32xf32>
    %cst = arith.constant dense<0xFF800000> : vector<16xf32>
    %1 = vector.multi_reduction <maximumf>, %0, %cst [1] : vector<16x32xf32> to vector<16xf32>
    %2 = vector.shape_cast %1 : vector<16xf32> to vector<16x1xf32>
    %3 = vector.broadcast %2 : vector<16x1xf32> to vector<16x32xf32>
    %4 = arith.subf %0, %3 : vector<16x32xf32>
    %5 = math.exp %4 : vector<16x32xf32>
    %cst_1 = arith.constant dense<0.000000e+00> : vector<16xf32>
    %6 = vector.multi_reduction <add>, %5, %cst_1 [1] : vector<16x32xf32> to vector<16xf32>
    %7 = vector.shape_cast %6 : vector<16xf32> to vector<16x1xf32>
    %8 = math.log %7 : vector<16x1xf32>
    %9 = arith.addf %2, %8 : vector<16x1xf32>
    %cst_2 = arith.constant dense<0.000000e+00> : vector<16xf32>
    %10 = vector.multi_reduction <add>, %0, %cst_2 [1] : vector<16x32xf32> to vector<16xf32>
    %11 = vector.shape_cast %10 : vector<16xf32> to vector<16x1xf32>
    %cst_3 = arith.constant 3.200000e+01 : f32
    %12 = vector.broadcast %cst_3 : f32 to vector<16x1xf32>
    %13 = arith.mulf %12, %9 : vector<16x1xf32>
    %14 = arith.subf %13, %11 : vector<16x1xf32>
    %c0_4 = arith.constant 0 : index
    %c0_5 = arith.constant 0 : index
    %15 = vector.load %arg3[%c0_4, %c0_5] : memref<16x1xf32, #tpu.memory_space<vmem>>, vector<16x1xf32>
    tpu.vector_store %arg3[%c0_4, %c0_5], %14 {strides = array<i32>} : memref<16x1xf32, #tpu.memory_space<vmem>>, vector<16x1xf32>,
    %c0_6 = arith.constant 0 : index
    %c0_7 = arith.constant 0 : index
    %16 = vector.load %arg2[%c0_6, %c0_7] : memref<16x1xi32, #tpu.memory_space<vmem>>, vector<16x1xi32>
    %17 = tpu.iota {dimensions = array<i32: 1>} : vector<16x32xi32>
    %18 = vector.broadcast %16 : vector<16x1xi32> to vector<16x32xi32>
    %19 = arith.cmpi eq, %17, %18 : vector<16x32xi32>
    %cst_8 = arith.constant 0.000000e+00 : f32
    %20 = vector.broadcast %cst_8 : f32 to vector<16x32xf32>
    %21 = arith.select %19, %0, %20 : vector<16x32xi1>, vector<16x32xf32>
    %cst_9 = arith.constant dense<0.000000e+00> : vector<16xf32>
    %22 = vector.multi_reduction <add>, %21, %cst_9 [1] : vector<16x32xf32> to vector<16xf32>
    %23 = vector.shape_cast %22 : vector<16xf32> to vector<16x1xf32>
    %24 = arith.subf %9, %23 : vector<16x1xf32>
    %c0_10 = arith.constant 0 : index
    %c0_11 = arith.constant 0 : index
    %25 = vector.load %arg4[%c0_10, %c0_11] : memref<16x1xf32, #tpu.memory_space<vmem>>, vector<16x1xf32>
    tpu.vector_store %arg4[%c0_10, %c0_11], %24 {strides = array<i32>} : memref<16x1xf32, #tpu.memory_space<vmem>>, vector<16x1xf32>,
    return
  }
  func.func @transform_0(%arg0: i32) -> (i32, i32) {
    %c0_i32 = arith.constant 0 : i32
    %c0_i32_0 = arith.constant 0 : i32
    return %arg0, %c0_i32 : i32, i32
  }
  func.func @transform_1(%arg0: i32) -> (i32, i32) {
    %c0_i32 = arith.constant 0 : i32
    %c0_i32_0 = arith.constant 0 : i32
    return %arg0, %c0_i32 : i32, i32
  }
  func.func @transform_2(%arg0: i32) -> (i32, i32) {
    %c0_i32 = arith.constant 0 : i32
    %c0_i32_0 = arith.constant 0 : i32
    return %arg0, %c0_i32 : i32, i32
  }
  func.func @transform_3(%arg0: i32) -> (i32, i32) {
    %c0_i32 = arith.constant 0 : i32
    %c0_i32_0 = arith.constant 0 : i32
    return %arg0, %c0_i32 : i32, i32
  }
}

</mosaic_0001>

<llo_original>
// kernel: tpu_custom_call.1
$region0: #{tpu_custom_call.1}
  #allocation0 [shape = 'u32[]', space=smem, size = 0x4, offset = 0x4, fixed_abs, tag = 'smem constant byte address 0x4 - core index']
  #allocation1 [shape = 'u32[72,128]{1,0:T(1,128)}', space=vmem, size = 0x9000, scoped, tag = 'internal scratch']
  %s0 = inlined_call_operand.vmem [shape: f32[16,32], index: 0, kind: input, shape index: {}]
  %s1 = inlined_call_operand.vmem [shape: s32[16,1], index: 1, kind: input, shape index: {}]
  %s2 = inlined_call_operand.vmem [shape: f32[16,1], index: 2, kind: output, shape index: {0}]
  %s3 = inlined_call_operand.vmem [shape: f32[16,1], index: 3, kind: output, shape index: {1}]
  %4 = xla_tuple %s2, %s3
  %s5 = sld [smem:[#allocation0]]
  $region26: #{tpu_custom_call.1} parent=0
    _
  %s7 = ssub.s32 1, %s5
  %s8 = scalar_select 0, %s7, %s5
  // Predicated region
  $region2: #{tpu_custom_call.1} parent=0 // pred_check
    _
  $region3: #{tpu_custom_call.1} parent=0 // pred_check_branch
    %10 = sbr.rel (0) target = $region5
  $region4: #{tpu_custom_call.1} parent=0 // pred_region
    _
  $region5: #{tpu_custom_call.1} parent=0 // pred_fallthru
    _
  // Predicated region
  $region6: #{tpu_custom_call.1} parent=0 // pred_check
    _
  $region7: #{tpu_custom_call.1} parent=0 // pred_check_branch
    %12 = sbr.rel (0) target = $region9
  $region8: #{tpu_custom_call.1} parent=0 // pred_region
    _
  $region9: #{tpu_custom_call.1} parent=0 // pred_fallthru
    _
  %v13 = vld [vmem:[%s0] sm:$0xff]
  %v14 = vld [vmem:[%s0 + $0x8] sm:$0xff]
  %vm15 = vcmask 261120
  %v16 = vsel %vm15, %v13, -inf
  %17 = vmax.xlane.f32.xlu0 %v16
  %v18 = vpop.xlane.xlu0 %17
  %v19 = vsel %vm15, %v14, -inf
  %20 = vmax.xlane.f32.xlu0 %v19
  %v21 = vpop.xlane.xlu0 %20
  %v22 = vsub.f32 %v13, %v18
  %v23 = vsub.f32 %v14, %v21
  %v24 = vmul.f32 %v22, 1.442695
  %v25 = vpow.pop %v24
  %v26 = vmul.f32 %v23, 1.442695
  %v27 = vpow.pop %v26
  %v28 = vsel %vm15, %v25, 0.0
  %29 = vadd.xlane.f32.xlu0 %v28
  %v30 = vpop.xlane.xlu0 %29
  %v31 = vsel %vm15, %v27, 0.0
  %32 = vadd.xlane.f32.xlu0 %v31
  %v33 = vpop.xlane.xlu0 %32
  %v34 = vlog2.pop %v30
  %v35 = vmul.f32 %v34, 0.6931472
  %v36 = vlog2.pop %v33
  %v37 = vmul.f32 %v36, 0.6931472
  %v38 = vadd.f32 %v18, %v35
  %v39 = vadd.f32 %v21, %v37
  %v40 = vsel %vm15, %v13, 0.0
  %41 = vadd.xlane.f32.xlu0 %v40
  %v42 = vpop.xlane.xlu0 %41
  %v43 = vsel %vm15, %v14, 0.0
  %44 = vadd.xlane.f32.xlu0 %v43
  %v45 = vpop.xlane.xlu0 %44
  %v46 = vmul.f32 %v38, 32.0
  %v47 = vmul.f32 %v39, 32.0
  %v48 = vsub.f32 %v46, %v42
  %v49 = vsub.f32 %v47, %v45
  %vm50 = vcmask 7168
  %51 = vst.msk [vmem:[%s2] sm:$0xff] %vm50, %v48
  %52 = vst.msk [vmem:[%s2 + $0x8] sm:$0xff] %vm50, %v49
  %v53 = vld [vmem:[%s1] sm:$0xff]
  %v54 = vld [vmem:[%s1 + $0x8] sm:$0xff]
  %v55 = vlaneseq
  %v56 = vand.u32 %v55, 127
  %57 = vset.pattern.permute.xlu0 0
  %58 = vperm.xlu0 %57, %v53
  %v59 = vpop.permute.xlu0 %58
  %60 = vset.pattern.permute.xlu0 0
  %61 = vperm.xlu0 %60, %v54
  %v62 = vpop.permute.xlu0 %61
  %vm63 = vcmp.eq.s32.totalorder %v56, %v59
  %vm64 = vcmp.eq.s32.totalorder %v56, %v62
  %v65 = vsel %vm63, %v13, 0.0
  %v66 = vsel %vm64, %v14, 0.0
  %v67 = vsel %vm15, %v65, 0.0
  %68 = vadd.xlane.f32.xlu0 %v67
  %v69 = vpop.xlane.xlu0 %68
  %v70 = vsel %vm15, %v66, 0.0
  %71 = vadd.xlane.f32.xlu0 %v70
  %v72 = vpop.xlane.xlu0 %71
  %v73 = vsub.f32 %v38, %v69
  %v74 = vsub.f32 %v39, %v72
  %75 = vst.msk [vmem:[%s3] sm:$0xff] %vm50, %v73
  %76 = vst.msk [vmem:[%s3 + $0x8] sm:$0xff] %vm50, %v74
  // Predicated region
  $region10: #{tpu_custom_call.1} parent=0 // pred_check
    _
  $region11: #{tpu_custom_call.1} parent=0 // pred_check_branch
    %78 = sbr.rel (0) target = $region13
  $region12: #{tpu_custom_call.1} parent=0 // pred_region
    _
  $region13: #{tpu_custom_call.1} parent=0 // pred_fallthru
    _
  // Predicated region
  $region14: #{tpu_custom_call.1} parent=0 // pred_check
    _
  $region15: #{tpu_custom_call.1} parent=0 // pred_check_branch
    %80 = sbr.rel (0) target = $region17
  $region16: #{tpu_custom_call.1} parent=0 // pred_region
    _
  $region17: #{tpu_custom_call.1} parent=0 // pred_fallthru
    _
  // Predicated region
  $region18: #{tpu_custom_call.1} parent=0 // pred_check
    _
  $region19: #{tpu_custom_call.1} parent=0 // pred_check_branch
    %82 = sbr.rel (0) target = $region21
  $region20: #{tpu_custom_call.1} parent=0 // pred_region
    _
  $region21: #{tpu_custom_call.1} parent=0 // pred_fallthru
    _
  // Predicated region
  $region22: #{tpu_custom_call.1} parent=0 // pred_check
    _
  $region23: #{tpu_custom_call.1} parent=0 // pred_check_branch
    %84 = sbr.rel (0) target = $region25
  $region24: #{tpu_custom_call.1} parent=0 // pred_region
    _
  $region25: #{tpu_custom_call.1} parent=0 // pred_fallthru
    _

</llo_original>
